<compile_context>
chip_gen: v7x
topology: tpu7x:2x2x1
jax: 0.10.0
libtpu: 0.0.40
codegen_flags: <defaults>
</compile_context>

<pallas_src>
import jax
import jax.numpy as jnp
from jax.experimental import pallas as pl
from jax.experimental.pallas import tpu as pltpu

FEATURES = 128
NUM_CLASSES = 2
_MAX_TB = 16384          # 8 MiB x-tile -> <= ~16.5 MiB double-buffered VMEM


def _round_up(n, m):
    return ((n + m - 1) // m) * m


def _cdiv(a, b):
    return -(-a // b)


def _loss_kernel(dw_ref, db_ref, x_ref, sw_ref, out_ref):
    x = x_ref[...]                       # (TB, 128) f32
    dw = dw_ref[...]                     # (1, 128)  f32, (w1 - w0) as a row
    db = db_ref[0, 0]                    # scalar f32, (b1 - b0), SMEM

    # Per-row logit margin d_i = x_i . (w1 - w0) + (b1 - b0).
    # VPU multiply (dw sublane-broadcast is free) + cross-lane sum on the XLU
    # slot; no MXU involvement, exact f32.
    d = jnp.sum(x * dw, axis=1, keepdims=True) + db            # (TB, 1)

    # Merged signed per-row weight sw_i = (1 - 2*label_i)/B (0 for pad rows):
    #   (1/B)*softplus(s_i d_i) = max(sw_i d_i, 0) + |sw_i| log(1 + exp(-|d_i|))
    # (|s_i| = 1 for real rows; padded rows contribute exactly 0).
    sw = sw_ref[...]                                           # (TB, 1)
    sp = jnp.maximum(sw * d, 0.0) \
        + jnp.abs(sw) * jnp.log(1.0 + jnp.exp(-jnp.abs(d)))
    # NOTE: on v7x the (TB, 1) softplus chain could additionally be packed 128
    # rows per vreg (sublane->lane relayout) to take it fully off the EUP
    # critical slot; skipped here because that relayout is not guaranteed to
    # lower cleanly on every Mosaic version, and v5e/v6e are HBM-bound already.
    partial = jnp.sum(sp)

    # Lane-dense partial-sum block (unmasked vst); the wrapper reads lane 0.
    out_ref[...] = jnp.full(out_ref.shape, partial, dtype=jnp.float32)


def loss_v(x, labels, weight, bias, *, block_rows=8192):
    """x: (B, 1, 128) f32, labels: (B,) int -> scalar f32 CE loss (mean)."""
    x2d = jnp.squeeze(x, axis=1).astype(jnp.float32)           # (B, 128)
    B = x2d.shape[0]

    # Collapse the 2-class linear head outside the kernel.
    w = weight.astype(jnp.float32)
    b = bias.astype(jnp.float32)
    dw = (w[1] - w[0]).reshape(1, FEATURES)                    # (1, 128) row
    db = (b[1] - b[0]).reshape(1, 1)                           # (1, 1) -> SMEM
    # Signed per-row mean weight: +1/B for label 0, -1/B for label 1.
    sw = ((1.0 - 2.0 * labels.astype(jnp.float32)) / B).reshape(B, 1)

    # --- batch tiling -------------------------------------------------------
    b8 = _round_up(B, 8)
    tb_max = min(_round_up(max(8, min(block_rows, b8)), 8), _MAX_TB)
    num_blocks = _cdiv(b8, tb_max)
    if b8 >= 16:
        # >= 2 blocks so the "parallel" axis shards across v7x's 2 TensorCores.
        num_blocks = max(num_blocks, 2)
    tb = _round_up(_cdiv(b8, num_blocks), 8)   # multiple of 8, minimal padding
    b_pad = tb * num_blocks

    if b_pad != B:
        pad = b_pad - B
        x2d = jnp.pad(x2d, ((0, pad), (0, 0)))
        sw = jnp.pad(sw, ((0, pad), (0, 0)))       # weight 0 -> pad rows no-op

    partials = pl.pallas_call(
        _loss_kernel,
        out_shape=jax.ShapeDtypeStruct((num_blocks, 1, 128), jnp.float32),
        grid=(num_blocks,),
        in_specs=[
            pl.BlockSpec((1, FEATURES), lambda i: (0, 0)),                 # dw
            pl.BlockSpec((1, 1), lambda i: (0, 0),
                         memory_space=pltpu.MemorySpace.SMEM),             # db
            pl.BlockSpec((tb, FEATURES), lambda i: (i, 0)),                # x
            pl.BlockSpec((tb, 1), lambda i: (i, 0)),                       # sw
        ],
        out_specs=pl.BlockSpec((1, 1, 128), lambda i: (i, 0, 0)),
        compiler_params=pltpu.CompilerParams(
            dimension_semantics=("parallel",),
            vmem_limit_bytes=32 << 20),
    )(dw, db, x2d, sw)

    # Finish the mean: per-row weights already carry 1/B.
    return jnp.sum(partials[:, 0, 0])


def _reference(x, labels, weight, bias):
    # Plain-JAX reference matching the PyTorch module.
    x2d = jnp.squeeze(x, axis=1)
    logits = x2d @ weight.T + bias
    logp = jax.nn.log_softmax(logits, axis=-1)
    nll = -jnp.take_along_axis(logp, labels[:, None].astype(jnp.int32), axis=-1)
    return jnp.mean(nll)


if __name__ == "__main__":
    key = jax.random.PRNGKey(0)
    k_x, k_lab, k_w, k_b = jax.random.split(key, 4)

    # Deterministic nn.Linear(128, 2)-style init (uniform in +/- 1/sqrt(fan_in))
    bound = 1.0 / jnp.sqrt(jnp.float32(FEATURES))
    weight = jax.random.uniform(k_w, (NUM_CLASSES, FEATURES),
                                minval=-bound, maxval=bound, dtype=jnp.float32)
    bias = jax.random.uniform(k_b, (NUM_CLASSES,),
                              minval=-bound, maxval=bound, dtype=jnp.float32)

    # Small case: single grid block.
    B = 8
    x = jax.random.normal(k_x, (B, 1, FEATURES), dtype=jnp.float32)
    labels = jax.random.randint(k_lab, (B,), 0, NUM_CLASSES, dtype=jnp.int32)
    loss = loss_v(x, labels, weight, bias)
    jax.block_until_ready(loss)
    ref = _reference(x, labels, weight, bias)
    assert jnp.allclose(loss, ref, rtol=1e-5, atol=1e-5), (loss, ref)

    # Larger case: exercises multi-block grid + batch padding path.
    B2 = 200
    k_x2, k_lab2 = jax.random.split(k_x)
    x2 = jax.random.normal(k_x2, (B2, 1, FEATURES), dtype=jnp.float32)
    labels2 = jax.random.randint(k_lab2, (B2,), 0, NUM_CLASSES, dtype=jnp.int32)
    loss2 = loss_v(x2, labels2, weight, bias, block_rows=64)
    jax.block_until_ready(loss2)
    ref2 = _reference(x2, labels2, weight, bias)
    assert jnp.allclose(loss2, ref2, rtol=1e-5, atol=1e-5), (loss2, ref2)

    print("KERNEL_OK")
</pallas_src>

<mosaic_0001>
module attributes {stable_mosaic.version = 11 : i64} {
  func.func @_loss_kernel(%arg0: i32, %arg1: memref<1x128xf32, #tpu.memory_space<vmem>>, %arg2: memref<1x1xf32, #tpu.memory_space<smem>>, %arg3: memref<8x128xf32, #tpu.memory_space<vmem>>, %arg4: memref<8x1xf32, #tpu.memory_space<vmem>>, %arg5: memref<1x1x128xf32, #tpu.memory_space<vmem>>) attributes {dimension_semantics = [#tpu.dimension_semantics<parallel>], iteration_bounds = array<i64: 1>, scalar_prefetch = 0 : i64, scratch_operands = 0 : i64, tpu.core_type = #tpu.core_type<tc>, window_params = [{pipeline_mode = #tpu.pipeline_mode<synchronous>, transform_indices = @transform_0, window_bounds = array<i64: 1, 128>}, {transform_indices = @transform_1, window_bounds = array<i64: 1, 1>}, {transform_indices = @transform_2, window_bounds = array<i64: 8, 128>}, {transform_indices = @transform_3, window_bounds = array<i64: 8, 1>}, {transform_indices = @transform_4, window_bounds = array<i64: 1, 1, 128>}]} {
    %c0 = arith.constant 0 : index
    %c0_0 = arith.constant 0 : index
    %0 = vector.load %arg3[%c0, %c0_0] : memref<8x128xf32, #tpu.memory_space<vmem>>, vector<8x128xf32>
    %c0_1 = arith.constant 0 : index
    %c0_2 = arith.constant 0 : index
    %1 = vector.load %arg1[%c0_1, %c0_2] : memref<1x128xf32, #tpu.memory_space<vmem>>, vector<1x128xf32>
    %c0_3 = arith.constant 0 : index
    %c0_4 = arith.constant 0 : index
    %2 = memref.load %arg2[%c0_3, %c0_4] : memref<1x1xf32, #tpu.memory_space<smem>>
    %3 = vector.broadcast %1 : vector<1x128xf32> to vector<8x128xf32>
    %4 = arith.mulf %0, %3 : vector<8x128xf32>
    %cst = arith.constant dense<0.000000e+00> : vector<8xf32>
    %5 = vector.multi_reduction <add>, %4, %cst [1] : vector<8x128xf32> to vector<8xf32>
    %6 = vector.shape_cast %5 : vector<8xf32> to vector<8x1xf32>
    %7 = vector.broadcast %2 : f32 to vector<8x1xf32>
    %8 = arith.addf %6, %7 : vector<8x1xf32>
    %c0_5 = arith.constant 0 : index
    %c0_6 = arith.constant 0 : index
    %9 = vector.load %arg4[%c0_5, %c0_6] : memref<8x1xf32, #tpu.memory_space<vmem>>, vector<8x1xf32>
    %10 = arith.mulf %9, %8 : vector<8x1xf32>
    %cst_7 = arith.constant 0.000000e+00 : f32
    %11 = vector.broadcast %cst_7 : f32 to vector<8x1xf32>
    %12 = arith.maximumf %10, %11 : vector<8x1xf32>
    %13 = math.absf %9 : vector<8x1xf32>
    %14 = math.absf %8 : vector<8x1xf32>
    %cst_8 = arith.constant 0.000000e+00 : f32
    %15 = vector.broadcast %cst_8 : f32 to vector<8x1xf32>
    %16 = arith.subf %15, %14 : vector<8x1xf32>
    %17 = math.exp %16 : vector<8x1xf32>
    %cst_9 = arith.constant 1.000000e+00 : f32
    %18 = vector.broadcast %cst_9 : f32 to vector<8x1xf32>
    %19 = arith.addf %18, %17 : vector<8x1xf32>
    %20 = math.log %19 : vector<8x1xf32>
    %21 = arith.mulf %13, %20 : vector<8x1xf32>
    %22 = arith.addf %12, %21 : vector<8x1xf32>
    %23 = vector.shape_cast %22 : vector<8x1xf32> to vector<1x8x1xf32>
    %cst_10 = arith.constant dense<0.000000e+00> : vector<1xf32>
    %24 = vector.multi_reduction <add>, %23, %cst_10 [1, 2] : vector<1x8x1xf32> to vector<1xf32>
    %25 = vector.shape_cast %24 : vector<1xf32> to vector<1x1x1xf32>
    %26 = vector.extract %25[0, 0, 0] : f32 from vector<1x1x1xf32>
    %27 = vector.broadcast %26 : f32 to vector<1x1x128xf32>
    %c0_11 = arith.constant 0 : index
    %c0_12 = arith.constant 0 : index
    %c0_13 = arith.constant 0 : index
    %28 = vector.load %arg5[%c0_11, %c0_12, %c0_13] : memref<1x1x128xf32, #tpu.memory_space<vmem>>, vector<1x1x128xf32>
    tpu.vector_store %arg5[%c0_11, %c0_12, %c0_13], %27 {strides = array<i32>} : memref<1x1x128xf32, #tpu.memory_space<vmem>>, vector<1x1x128xf32>,
    return
  }
  func.func @transform_0(%arg0: i32) -> (i32, i32) {
    %c0_i32 = arith.constant 0 : i32
    %c0_i32_0 = arith.constant 0 : i32
    %c0_i32_1 = arith.constant 0 : i32
    return %c0_i32, %c0_i32_0 : i32, i32
  }
  func.func @transform_1(%arg0: i32) -> (i32, i32) {
    %c0_i32 = arith.constant 0 : i32
    %c0_i32_0 = arith.constant 0 : i32
    %c0_i32_1 = arith.constant 0 : i32
    return %c0_i32, %c0_i32_0 : i32, i32
  }
  func.func @transform_2(%arg0: i32) -> (i32, i32) {
    %c0_i32 = arith.constant 0 : i32
    %c0_i32_0 = arith.constant 0 : i32
    return %arg0, %c0_i32 : i32, i32
  }
  func.func @transform_3(%arg0: i32) -> (i32, i32) {
    %c0_i32 = arith.constant 0 : i32
    %c0_i32_0 = arith.constant 0 : i32
    return %arg0, %c0_i32 : i32, i32
  }
  func.func @transform_4(%arg0: i32) -> (i32, i32, i32) {
    %c0_i32 = arith.constant 0 : i32
    %c0_i32_0 = arith.constant 0 : i32
    %c0_i32_1 = arith.constant 0 : i32
    return %arg0, %c0_i32, %c0_i32_0 : i32, i32, i32
  }
}

</mosaic_0001>

<llo_original>
// kernel: tpu_custom_call.1
$region0: #{tpu_custom_call.1}
  #allocation0 [shape = 'u32[]', space=smem, size = 0x4, offset = 0x4, fixed_abs, tag = 'smem constant byte address 0x4 - core index']
  #allocation1 [shape = 'u32[144,128]{1,0:T(1,128)}', space=vmem, size = 0x12000, scoped, tag = 'internal scratch']
  #allocation2 [shape = 'f32[1,1]{1,0:T(1,128)S(6)}', space=smem, size = 0x200, scoped, tag = 'scoped memory for tpu_custom_call.1']
  %s0 = inlined_call_operand.vmem [shape: f32[1,128], index: 0, kind: input, shape index: {}]
  %s1 = inlined_call_operand.<no memory space> [shape: f32[1,1], index: 1, kind: input, shape index: {}]
  %s2 = inlined_call_operand.vmem [shape: f32[8,128], index: 2, kind: input, shape index: {}]
  %s3 = inlined_call_operand.vmem [shape: f32[8,1], index: 3, kind: input, shape index: {}]
  %s4 = inlined_call_operand.hbm [shape: f32[1,1,128], index: 4, kind: output, shape index: {}]
  %s5 = sld [smem:[#allocation0]]
  $region26: #{tpu_custom_call.1} parent=0
    _
  %s7 = ssub.s32 1, %s5
  %s8 = scalar_select 0, %s7, %s5
  %9 = sst [smem:[#allocation2]] %s1
  $region1: #{tpu_custom_call.1} parent=0
    #allocation3 [shape = 'u8[512]{0}', space=vmem, size = 0x400, scoped, tag = 'output window, operand 0, single buffered']
    #allocation4 [shape = 's32[1]{0}', space=sflag, size = 0x4, scoped, tag = 'scoped memory for tpu_custom_call.1']
    %10 = vsyncpa [#allocation4], 0
    // Predicated region
    $region2: #{tpu_custom_call.1} parent=1 // pred_check
      _
    $region3: #{tpu_custom_call.1} parent=1 // pred_check_branch
      %12 = sbr.rel (0) target = $region5
    $region4: #{tpu_custom_call.1} parent=1 // pred_region
      _
    $region5: #{tpu_custom_call.1} parent=1 // pred_fallthru
      _
    // Predicated region
    $region6: #{tpu_custom_call.1} parent=1 // pred_check
      _
    $region7: #{tpu_custom_call.1} parent=1 // pred_check_branch
      %14 = sbr.rel (0) target = $region9
    $region8: #{tpu_custom_call.1} parent=1 // pred_region
      _
    $region9: #{tpu_custom_call.1} parent=1 // pred_fallthru
      _
    // Predicated region
    $region10: #{tpu_custom_call.1} parent=1 // pred_check
      _
    $region11: #{tpu_custom_call.1} parent=1 // pred_check_branch
      %16 = sbr.rel (0) target = $region13
    $region12: #{tpu_custom_call.1} parent=1 // pred_region
      _
    $region13: #{tpu_custom_call.1} parent=1 // pred_fallthru
      _
    // Predicated region
    $region14: #{tpu_custom_call.1} parent=1 // pred_check
      _
    $region15: #{tpu_custom_call.1} parent=1 // pred_check_branch
      %18 = sbr.rel (0) target = $region17
    $region16: #{tpu_custom_call.1} parent=1 // pred_region
      _
    $region17: #{tpu_custom_call.1} parent=1 // pred_fallthru
      _
    %v19 = vld [vmem:[%s2] sm:$0xff]
    %v20 = vld [vmem:[%s0] sm:$0x1]
    %s21 = sld [smem:[#allocation2]]
    %v23 = vlaneseq
    %v24 = vshrl.u32 %v23, 7
    %v25 = vsub.s32 0, %v24
    %v26 = vrot.slane %v20, %v25
    %v28 = vmul.f32 %v19, %v26
    %29 = vadd.xlane.f32.xlu0 %v28
    %v30 = vpop.xlane.xlu0 %29
    %v31 = vstv %s21
    %v32 = vadd.f32 %v30, %v31
    %v33 = vld [vmem:[%s3] sm:$0xff]
    %v34 = vmul.f32 %v33, %v32
    %v35 = vmax.f32 %v34, 0.0
    %v36 = vand.u32 2147483647, %v33
    %v37 = vand.u32 2147483647, %v32
    %v38 = vsub.f32 0.0, %v37
    %v39 = vmul.f32 %v38, 1.442695
    %v40 = vpow.pop %v39
    %v41 = vadd.f32 %v40, 1.0
    %v42 = vlog2.pop %v41
    %v43 = vmul.f32 %v42, 0.6931472
    %v44 = vmul.f32 %v36, %v43
    %v45 = vadd.f32 %v35, %v44
    %vm46 = vcmask 7168
    %v47 = vsel %vm46, %v45, 0.0
    %48 = vadd.xlane.f32.xlu0 %v47
    %v49 = vpop.xlane.xlu0 %48
    %v50 = vrot.slane %v49, 4
    %v51 = vadd.f32 %v49, %v50
    %v52 = vrot.slane %v51, 2
    %v53 = vadd.f32 %v51, %v52
    %v54 = vrot.slane %v53, 1
    %v55 = vadd.f32 %v53, %v54
    %s56 = vtos %v55
    %v57 = vstv %s56
    %58 = vst [vmem:[#allocation3] sm:$0x1] %v57
    // Predicated region
    $region18: #{tpu_custom_call.1} parent=1 // pred_check
      _
    $region19: #{tpu_custom_call.1} parent=1 // pred_check_branch
      %60 = sbr.rel (0) target = $region21
    $region20: #{tpu_custom_call.1} parent=1 // pred_region
      %s62 = ssub.s32 16, 16
      %63 = vsyncadd [#allocation4], %s62
      %s65 = sshll.u32 [#allocation3], 4
      %s66 = int_to_ptr.vmem [resolvable:$true] %s65
      %68 = dma.vmem_to_hbm [thread:$0]  %s66, 16, %s4, [#allocation4]
    $region21: #{tpu_custom_call.1} parent=1 // pred_fallthru
      _
    // Predicated region
    $region22: #{tpu_custom_call.1} parent=1 // pred_check
      _
    $region23: #{tpu_custom_call.1} parent=1 // pred_check_branch
      %70 = sbr.rel (0) target = $region25
    $region24: #{tpu_custom_call.1} parent=1 // pred_region
      %71 = dma.done [#allocation4], 16
    $region25: #{tpu_custom_call.1} parent=1 // pred_fallthru
      _
    %72 = vsyncpa [#allocation4], 1

</llo_original>
